<compile_context>
chip_gen: v6e
topology: v6e:2x2x1
jax: 0.10.0
libtpu: 0.0.40
codegen_flags: <defaults>
</compile_context>

<pallas_src>
import functools

import jax
import jax.numpy as jnp
from jax.experimental import pallas as pl
from jax.experimental.pallas import tpu as pltpu


def _round_up(x, m):
    return ((x + m - 1) // m) * m


# ---------------------------------------------------------------------------
# Small-problem path: one un-gridded launch, full blocks, no padding.
# ---------------------------------------------------------------------------
def _linreg_small_kernel(x_ref, w_ref, b_ref, o_ref):
    # x_ref: (B, F) VMEM | w_ref: (1, F) VMEM | b_ref: (1,) SMEM | o_ref: (B, 1) VMEM
    prod = x_ref[...] * w_ref[...]                      # VPU, sublane-broadcast of the w row
    s = jnp.sum(prod.astype(jnp.float32), axis=-1, keepdims=True)   # XLU lane reduce
    o_ref[...] = (s + b_ref[0]).astype(o_ref.dtype)


# ---------------------------------------------------------------------------
# Streaming path: batch tiles on a "parallel" axis, feature chunks on an
# "arbitrary" axis, resident output block used as the accumulator.
# ---------------------------------------------------------------------------
def _linreg_tiled_kernel(x_ref, w_ref, b_ref, o_ref, *, tile_f, feat_dim, f_ragged):
    # x_ref: (tile_b, tile_f) | w_ref: (1, tile_f) | b_ref: (1,) SMEM | o_ref: (tile_b, 1)
    k = pl.program_id(1)

    @pl.when(k == 0)
    def _init():
        o_ref[...] = jnp.zeros_like(o_ref)

    prod = x_ref[...] * w_ref[...]                      # VPU elementwise
    if f_ragged:
        # Last feature chunk extends past F: zero the garbage lanes before reducing.
        lane = jax.lax.broadcasted_iota(jnp.int32, prod.shape, dimension=1)
        prod = jnp.where(lane + k * tile_f < feat_dim, prod, 0.0)
    partial = jnp.sum(prod.astype(jnp.float32), axis=-1, keepdims=True)   # (tile_b, 1)
    o_ref[...] += partial.astype(o_ref.dtype)

    @pl.when(k == pl.num_programs(1) - 1)
    def _finalize():
        o_ref[...] = (o_ref[...] + b_ref[0]).astype(o_ref.dtype)


def linear_regression_forward(x, weight, bias, *,
                              max_tile_b=8192,
                              max_tile_f=1024,
                              target_x_tile_bytes=1 << 20):
    """y = x @ weight.T + bias, matching torch.nn.Linear(in_features, 1).

    x: (B, F) f32, weight: (1, F) f32 (nn.Linear layout), bias: (1,) f32 -> (B, 1) f32.
    """
    B, F = x.shape
    w_row = jnp.asarray(weight).reshape(1, F)
    b_arr = jnp.asarray(bias).reshape(1)
    itemsize = x.dtype.itemsize

    # -------- small problems: one launch, zero padding --------------------
    if B <= 1024 and B * F * itemsize <= (4 << 20):
        return pl.pallas_call(
            _linreg_small_kernel,
            out_shape=jax.ShapeDtypeStruct((B, 1), x.dtype),
            in_specs=[
                pl.BlockSpec(memory_space=pltpu.MemorySpace.VMEM),   # x, full block
                pl.BlockSpec(memory_space=pltpu.MemorySpace.VMEM),   # weight row
                pl.BlockSpec(memory_space=pltpu.MemorySpace.SMEM),   # bias scalar
            ],
            out_specs=pl.BlockSpec(memory_space=pltpu.MemorySpace.VMEM),
        )(x, w_row, b_arr)

    # -------- streaming path ----------------------------------------------
    # Feature chunking ("arbitrary" reduction axis) only for large F.
    tile_f = F if F <= max_tile_f else max_tile_f        # max_tile_f is a multiple of 128
    num_f_steps = pl.cdiv(F, tile_f)
    f_ragged = (F % tile_f) != 0

    # Batch tile: target ~1 MiB per x buffer (amortizes per-grid-step overhead), capped so
    # the lane-padded (tile_b, 1) output block stays cheap and the double-buffered working
    # set fits every generation's default scoped VMEM (16 MiB on v5e, 32 MiB on v6e/v7x).
    tile_b = max(128, min(max_tile_b, target_x_tile_bytes // (tile_f * itemsize)))
    tile_b = (tile_b // 128) * 128
    num_b_steps = pl.cdiv(B, tile_b)
    if num_b_steps < 2 and B >= 256:
        num_b_steps = 2                                   # >=2 parallel steps for v7x's 2 TCs
    tile_b = _round_up(pl.cdiv(B, num_b_steps), 128)      # minimize ragged-tile waste
    if tile_b >= B:
        tile_b = B                                        # full-dim block is always legal
    num_b_steps = pl.cdiv(B, tile_b)

    # VMEM working-set estimate: x + out double-buffered, weight row resident.
    vmem_est = (2 * tile_b * tile_f + 2 * tile_b * 128 + 2 * 8 * tile_f) * itemsize
    cp = dict(dimension_semantics=("parallel", "arbitrary"))
    if vmem_est > (12 << 20):
        cp["vmem_limit_bytes"] = min(int(vmem_est * 1.5), 48 << 20)

    kernel = functools.partial(_linreg_tiled_kernel,
                               tile_f=tile_f, feat_dim=F, f_ragged=f_ragged)

    return pl.pallas_call(
        kernel,
        out_shape=jax.ShapeDtypeStruct((B, 1), x.dtype),
        grid=(num_b_steps, num_f_steps),
        in_specs=[
            pl.BlockSpec((tile_b, tile_f), lambda i, k: (i, k)),     # x streamed, natural layout
            pl.BlockSpec((1, tile_f), lambda i, k: (0, k)),          # weight row chunk
            pl.BlockSpec(memory_space=pltpu.MemorySpace.SMEM),       # bias scalar
        ],
        out_specs=pl.BlockSpec((tile_b, 1), lambda i, k: (i, 0)),    # resident accumulator
        compiler_params=pltpu.CompilerParams(**cp),
    )(x, w_row, b_arr)


if __name__ == "__main__":
    # Shapes consistent with the module: batch=8, in_features=32 (single-launch path).
    B, F = 8, 32
    key = jax.random.PRNGKey(0)
    kx, kw, kb = jax.random.split(key, 3)

    x = jax.random.normal(kx, (B, F), dtype=jnp.float32)
    # nn.Linear default init: U(-1/sqrt(F), 1/sqrt(F)).
    bound = 1.0 / jnp.sqrt(jnp.float32(F))
    weight = jax.random.uniform(kw, (1, F), jnp.float32, -bound, bound)
    bias = jax.random.uniform(kb, (1,), jnp.float32, -bound, bound)

    y = jax.block_until_ready(linear_regression_forward(x, weight, bias))
    y_ref = x @ weight.T + bias
    assert y.shape == (B, 1)
    assert jnp.allclose(y, y_ref, atol=1e-5, rtol=1e-5)

    # Also exercise the tiled streaming path (2x2 grid, ragged batch tile, ragged
    # feature chunk + accumulation) at a still-small size.
    B2, F2 = 1200, 160
    k2x, k2w, k2b = jax.random.split(jax.random.PRNGKey(1), 3)
    x2 = jax.random.normal(k2x, (B2, F2), dtype=jnp.float32)
    w2 = jax.random.uniform(k2w, (1, F2), jnp.float32, -0.1, 0.1)
    b2 = jax.random.uniform(k2b, (1,), jnp.float32, -0.1, 0.1)
    y2 = jax.block_until_ready(linear_regression_forward(x2, w2, b2, max_tile_f=128))
    y2_ref = x2 @ w2.T + b2
    assert y2.shape == (B2, 1)
    assert jnp.allclose(y2, y2_ref, atol=1e-4, rtol=1e-4)

    print("KERNEL_OK")
</pallas_src>

<mosaic_0001>
module attributes {stable_mosaic.version = 11 : i64} {
  func.func @_linreg_small_kernel(%arg0: memref<8x32xf32, #tpu.memory_space<vmem>>, %arg1: memref<1x32xf32, #tpu.memory_space<vmem>>, %arg2: memref<1xf32, #tpu.memory_space<smem>>, %arg3: memref<8x1xf32, #tpu.memory_space<vmem>>) attributes {dimension_semantics = [], scalar_prefetch = 0 : i64, scratch_operands = 0 : i64, tpu.core_type = #tpu.core_type<tc>} {
    %c0 = arith.constant 0 : index
    %c0_0 = arith.constant 0 : index
    %0 = vector.load %arg0[%c0, %c0_0] : memref<8x32xf32, #tpu.memory_space<vmem>>, vector<8x32xf32>
    %c0_1 = arith.constant 0 : index
    %c0_2 = arith.constant 0 : index
    %1 = vector.load %arg1[%c0_1, %c0_2] : memref<1x32xf32, #tpu.memory_space<vmem>>, vector<1x32xf32>
    %2 = vector.broadcast %1 : vector<1x32xf32> to vector<8x32xf32>
    %3 = arith.mulf %0, %2 : vector<8x32xf32>
    %cst = arith.constant dense<0.000000e+00> : vector<8xf32>
    %4 = vector.multi_reduction <add>, %3, %cst [1] : vector<8x32xf32> to vector<8xf32>
    %5 = vector.shape_cast %4 : vector<8xf32> to vector<8x1xf32>
    %c0_3 = arith.constant 0 : index
    %6 = memref.load %arg2[%c0_3] : memref<1xf32, #tpu.memory_space<smem>>
    %7 = vector.broadcast %6 : f32 to vector<8x1xf32>
    %8 = arith.addf %5, %7 : vector<8x1xf32>
    %c0_4 = arith.constant 0 : index
    %c0_5 = arith.constant 0 : index
    %9 = vector.load %arg3[%c0_4, %c0_5] : memref<8x1xf32, #tpu.memory_space<vmem>>, vector<8x1xf32>
    tpu.vector_store %arg3[%c0_4, %c0_5], %8 {strides = array<i32>} : memref<8x1xf32, #tpu.memory_space<vmem>>, vector<8x1xf32>,
    return
  }
}

</mosaic_0001>

<llo_original>
// kernel: tpu_custom_call.1
$region0: #{tpu_custom_call.1}
  #allocation0 [shape = 'u32[]', space=smem, size = 0x4, offset = 0x4, fixed_abs, tag = 'smem constant byte address 0x4 - core index']
  #allocation1 [shape = 'u32[144,128]{1,0:T(1,128)}', space=vmem, size = 0x12000, scoped, tag = 'internal scratch']
  #allocation2 [shape = 'f32[1]{0:T(128)S(6)}', space=smem, size = 0x200, scoped, tag = 'scoped memory for tpu_custom_call.1']
  %s0 = inlined_call_operand.hbm [shape: f32[8,32], index: 0, kind: input, shape index: {}]
  %s1 = inlined_call_operand.vmem [shape: f32[1,32], index: 1, kind: input, shape index: {}]
  %s2 = inlined_call_operand.<no memory space> [shape: f32[1], index: 2, kind: input, shape index: {}]
  %s3 = inlined_call_operand.vmem [shape: f32[8,1], index: 3, kind: output, shape index: {}]
  %s4 = sld [smem:[#allocation0]]
  $region26: #{tpu_custom_call.1} parent=0
    _
  %s6 = ssub.s32 1, %s4
  %s7 = scalar_select 0, %s6, %s4
  %8 = sst [smem:[#allocation2]] %s2
  $region1: #{tpu_custom_call.1} parent=0
    #allocation3 [shape = 'u8[4096]{0}', space=vmem, size = 0x1000, scoped, tag = 'input window, operand 0, single buffered']
    #allocation4 [shape = 's32[1]{0}', space=sflag, size = 0x4, scoped, tag = 'scoped memory for tpu_custom_call.1']
    %9 = vsyncpa [#allocation4], 0
    // Predicated region
    $region2: #{tpu_custom_call.1} parent=1 // pred_check
      _
    $region3: #{tpu_custom_call.1} parent=1 // pred_check_branch
      %11 = sbr.rel (0) target = $region5
    $region4: #{tpu_custom_call.1} parent=1 // pred_region
      %s13 = ssub.s32 128, 128
      %14 = vsyncadd [#allocation4], %s13
      %s16 = sshll.u32 [#allocation3], 4
      %s17 = int_to_ptr.vmem [resolvable:$true] %s16
      %19 = dma.hbm_to_vmem [thread:$0]  %s0, 128, %s17, [#allocation4]
    $region5: #{tpu_custom_call.1} parent=1 // pred_fallthru
      _
    // Predicated region
    $region6: #{tpu_custom_call.1} parent=1 // pred_check
      _
    $region7: #{tpu_custom_call.1} parent=1 // pred_check_branch
      %21 = sbr.rel (0) target = $region9
    $region8: #{tpu_custom_call.1} parent=1 // pred_region
      _
    $region9: #{tpu_custom_call.1} parent=1 // pred_fallthru
      _
    // Predicated region
    $region10: #{tpu_custom_call.1} parent=1 // pred_check
      _
    $region11: #{tpu_custom_call.1} parent=1 // pred_check_branch
      %23 = sbr.rel (0) target = $region13
    $region12: #{tpu_custom_call.1} parent=1 // pred_region
      _
    $region13: #{tpu_custom_call.1} parent=1 // pred_fallthru
      _
    // Predicated region
    $region14: #{tpu_custom_call.1} parent=1 // pred_check
      _
    $region15: #{tpu_custom_call.1} parent=1 // pred_check_branch
      %25 = sbr.rel (0) target = $region17
    $region16: #{tpu_custom_call.1} parent=1 // pred_region
      %26 = dma.done [#allocation4], 128
    $region17: #{tpu_custom_call.1} parent=1 // pred_fallthru
      _
    %v27 = vld [vmem:[#allocation3] sm:$0xff]
    %v28 = vld [vmem:[%s1] sm:$0x1]
    %v30 = vlaneseq
    %v31 = vshrl.u32 %v30, 7
    %v32 = vsub.s32 0, %v31
    %v33 = vrot.slane %v28, %v32
    %v35 = vmul.f32 %v27, %v33
    %vm36 = vcmask 261120
    %v37 = vsel %vm36, %v35, 0.0
    %38 = vadd.xlane.f32.xlu0 %v37
    %v39 = vpop.xlane.xlu0 %38
    %s40 = sld [smem:[#allocation2]]
    %v41 = vstv %s40
    %v42 = vadd.f32 %v39, %v41
    %vm43 = vcmask 7168
    %44 = vst.msk [vmem:[%s3] sm:$0xff] %vm43, %v42
    // Predicated region
    $region18: #{tpu_custom_call.1} parent=1 // pred_check
      _
    $region19: #{tpu_custom_call.1} parent=1 // pred_check_branch
      %46 = sbr.rel (0) target = $region21
    $region20: #{tpu_custom_call.1} parent=1 // pred_region
      _
    $region21: #{tpu_custom_call.1} parent=1 // pred_fallthru
      _
    // Predicated region
    $region22: #{tpu_custom_call.1} parent=1 // pred_check
      _
    $region23: #{tpu_custom_call.1} parent=1 // pred_check_branch
      %48 = sbr.rel (0) target = $region25
    $region24: #{tpu_custom_call.1} parent=1 // pred_region
      _
    $region25: #{tpu_custom_call.1} parent=1 // pred_fallthru
      _
    %49 = vsyncpa [#allocation4], 1

</llo_original>
